<compile_context>
chip_gen: v6e
topology: v6e:2x2x1
jax: 0.10.0
libtpu: 0.0.40
codegen_flags: <defaults>
</compile_context>

<pallas_src>
import functools
import math

import jax
import jax.numpy as jnp
from jax import lax
from jax.experimental import pallas as pl
from jax.experimental.pallas import tpu as pltpu


# Contract over the last dim of both operands:
#   (hidden, n_in) x (batch_tile, n_in) -> (hidden, batch_tile)
_NT_DIMS = (((1,), (1,)), ((), ()))


def _sum_of_relu_kernel(x_ref, w1_ref, o_ref, *, n_out, n_summands):
    # x_ref : (tm, n_in)      batch tile of `state`
    # w1_ref: (hidden, n_in)  fc1.weight in native PyTorch layout, resident across grid
    # o_ref : (n_out, tm)     transposed output tile (lane-dense over the batch)
    h_t = lax.dot_general(
        w1_ref[...], x_ref[...], _NT_DIMS,
        preferred_element_type=jnp.float32)          # (hidden, tm) on the MXU
    h_t = jnp.maximum(h_t, 0.0)                      # relu on the VPU

    # Segment sum replacing the block-diagonal-ones matmul:
    # output row i = sum of its n_summands consecutive hidden rows.
    # n_out is a small static Python int, so this unrolls at trace time; the
    # cross-sublane reductions run on the XLU, which has free slots here.
    for i in range(n_out):
        blk = h_t[i * n_summands:(i + 1) * n_summands, :]          # (n_summands, tm)
        o_ref[i:i + 1, :] = jnp.sum(blk, axis=0, keepdims=True).astype(o_ref.dtype)


def sum_of_relu(state, w1, n_out, n_summands, *, block_b=None):
    """Forward pass of SumOfRelu.

    state: (B, n_in)
    w1   : fc1.weight, shape (n_summands * n_out, n_in), native PyTorch layout
           (no transpose needed anywhere).
    Returns (B, n_out), matching the PyTorch module.
    """
    B, n_in = state.shape
    hidden = w1.shape[0]
    assert hidden == n_out * n_summands, "w1 must have n_summands*n_out rows"

    # Batch tile: whole batch for small B; 512-row tiles (8/128 aligned, lane-dense
    # output slabs) once B is large enough to be worth pipelining.
    if block_b is None:
        block_b = B if B <= 512 else 512
    if B % block_b != 0:
        block_b = B   # demo-friendly fallback; production shapes should pick a divisor
    grid = (B // block_b,)

    y_t = pl.pallas_call(
        functools.partial(_sum_of_relu_kernel, n_out=n_out, n_summands=n_summands),
        out_shape=jax.ShapeDtypeStruct((n_out, B), state.dtype),
        grid=grid,
        in_specs=[
            # state tile, pipelined (double-buffered) over the batch grid axis
            pl.BlockSpec((block_b, n_in), lambda j: (j, 0)),
            # full weight matrix, same block every step -> stays resident in VMEM
            pl.BlockSpec((hidden, n_in), lambda j: (0, 0)),
        ],
        out_specs=pl.BlockSpec((n_out, block_b), lambda j: (0, j)),
        compiler_params=pltpu.CompilerParams(
            # batch tiles are independent -> megacore sharding on v7x's 2 TCs
            dimension_semantics=("parallel",)),
    )(state, w1)

    # Tiny (n_out, B) -> (B, n_out) layout fix outside the kernel so callers see
    # the PyTorch output layout (callers can also consume y_t directly).
    return y_t.T


def make_out_matrix(n_out, n_summands, dtype=jnp.float32):
    """Literal replica of the block-diagonal-of-ones 'out' matrix built in __init__.

    Only used for the pure-JAX reference check; the kernel no longer needs it."""
    rows = []
    for i in range(n_out):
        row = jnp.concatenate([
            jnp.zeros((i * n_summands,), dtype),
            jnp.ones((n_summands,), dtype),
            jnp.zeros(((n_out - i - 1) * n_summands,), dtype),
        ])
        rows.append(row)
    return jnp.stack(rows, axis=0)     # (n_out, n_summands*n_out)


if __name__ == "__main__":
    # Small shapes implied by the module: state is (batch, n_in).
    batch, n_in, n_out, n_summands = 8, 16, 4, 3
    hidden = n_summands * n_out

    key = jax.random.PRNGKey(0)
    k_x, k_w = jax.random.split(key)

    x = jax.random.normal(k_x, (batch, n_in), dtype=jnp.float32)
    # Deterministic weight init mirroring nn.Linear's U(-1/sqrt(n_in), 1/sqrt(n_in)).
    bound = 1.0 / math.sqrt(n_in)
    w1 = jax.random.uniform(k_w, (hidden, n_in), dtype=jnp.float32,
                            minval=-bound, maxval=bound)

    y = sum_of_relu(x, w1, n_out, n_summands)
    jax.block_until_ready(y)

    # Pure-JAX reference reproducing the module literally (relu then ones-matrix matmul).
    out_mat = make_out_matrix(n_out, n_summands)
    ref = jnp.maximum(x @ w1.T, 0.0) @ out_mat.T

    assert y.shape == (batch, n_out)
    assert jnp.allclose(y, ref, atol=1e-5, rtol=1e-5)

    print("KERNEL_OK")
</pallas_src>

<mosaic_0001>
module attributes {stable_mosaic.version = 11 : i64} {
  func.func @_sum_of_relu_kernel(%arg0: i32, %arg1: memref<8x16xf32, #tpu.memory_space<vmem>>, %arg2: memref<12x16xf32, #tpu.memory_space<vmem>>, %arg3: memref<4x8xf32, #tpu.memory_space<vmem>>) attributes {dimension_semantics = [#tpu.dimension_semantics<parallel>], iteration_bounds = array<i64: 1>, scalar_prefetch = 0 : i64, scratch_operands = 0 : i64, tpu.core_type = #tpu.core_type<tc>, window_params = [{transform_indices = @transform_0, window_bounds = array<i64: 8, 16>}, {pipeline_mode = #tpu.pipeline_mode<synchronous>, transform_indices = @transform_1, window_bounds = array<i64: 12, 16>}, {transform_indices = @transform_2, window_bounds = array<i64: 4, 8>}]} {
    %c0 = arith.constant 0 : index
    %c0_0 = arith.constant 0 : index
    %0 = vector.load %arg2[%c0, %c0_0] : memref<12x16xf32, #tpu.memory_space<vmem>>, vector<12x16xf32>
    %c0_1 = arith.constant 0 : index
    %c0_2 = arith.constant 0 : index
    %1 = vector.load %arg1[%c0_1, %c0_2] : memref<8x16xf32, #tpu.memory_space<vmem>>, vector<8x16xf32>
    %cst = arith.constant dense<0.000000e+00> : vector<12x8xf32>
    %2 = tpu.matmul %0, %1, %cst {dimension_numbers = #tpu.dot_dimension_numbers<[1], [1], [0], [0], [0, 0, 1, 0], [], []>} : vector<12x16xf32>, vector<8x16xf32>, vector<12x8xf32> -> vector<12x8xf32>
    %cst_3 = arith.constant 0.000000e+00 : f32
    %3 = vector.broadcast %cst_3 : f32 to vector<12x8xf32>
    %4 = arith.maximumf %2, %3 : vector<12x8xf32>
    %5 = vector.extract_strided_slice %4 {offsets = [0, 0], sizes = [3, 8], strides = [1, 1]} : vector<12x8xf32> to vector<3x8xf32>
    %cst_4 = arith.constant dense<0.000000e+00> : vector<8xf32>
    %6 = vector.multi_reduction <add>, %5, %cst_4 [0] : vector<3x8xf32> to vector<8xf32>
    %7 = vector.shape_cast %6 : vector<8xf32> to vector<1x8xf32>
    %c0_5 = arith.constant 0 : index
    %c0_6 = arith.constant 0 : index
    %8 = vector.load %arg3[%c0_5, %c0_6] : memref<4x8xf32, #tpu.memory_space<vmem>>, vector<1x8xf32>
    tpu.vector_store %arg3[%c0_5, %c0_6], %7 {strides = array<i32>} : memref<4x8xf32, #tpu.memory_space<vmem>>, vector<1x8xf32>,
    %9 = vector.extract_strided_slice %4 {offsets = [3, 0], sizes = [3, 8], strides = [1, 1]} : vector<12x8xf32> to vector<3x8xf32>
    %cst_7 = arith.constant dense<0.000000e+00> : vector<8xf32>
    %10 = vector.multi_reduction <add>, %9, %cst_7 [0] : vector<3x8xf32> to vector<8xf32>
    %11 = vector.shape_cast %10 : vector<8xf32> to vector<1x8xf32>
    %c1 = arith.constant 1 : index
    %c0_8 = arith.constant 0 : index
    %12 = vector.load %arg3[%c1, %c0_8] : memref<4x8xf32, #tpu.memory_space<vmem>>, vector<1x8xf32>
    tpu.vector_store %arg3[%c1, %c0_8], %11 {strides = array<i32>} : memref<4x8xf32, #tpu.memory_space<vmem>>, vector<1x8xf32>,
    %13 = vector.extract_strided_slice %4 {offsets = [6, 0], sizes = [3, 8], strides = [1, 1]} : vector<12x8xf32> to vector<3x8xf32>
    %cst_9 = arith.constant dense<0.000000e+00> : vector<8xf32>
    %14 = vector.multi_reduction <add>, %13, %cst_9 [0] : vector<3x8xf32> to vector<8xf32>
    %15 = vector.shape_cast %14 : vector<8xf32> to vector<1x8xf32>
    %c2 = arith.constant 2 : index
    %c0_10 = arith.constant 0 : index
    %16 = vector.load %arg3[%c2, %c0_10] : memref<4x8xf32, #tpu.memory_space<vmem>>, vector<1x8xf32>
    tpu.vector_store %arg3[%c2, %c0_10], %15 {strides = array<i32>} : memref<4x8xf32, #tpu.memory_space<vmem>>, vector<1x8xf32>,
    %17 = vector.extract_strided_slice %4 {offsets = [9, 0], sizes = [3, 8], strides = [1, 1]} : vector<12x8xf32> to vector<3x8xf32>
    %cst_11 = arith.constant dense<0.000000e+00> : vector<8xf32>
    %18 = vector.multi_reduction <add>, %17, %cst_11 [0] : vector<3x8xf32> to vector<8xf32>
    %19 = vector.shape_cast %18 : vector<8xf32> to vector<1x8xf32>
    %c3 = arith.constant 3 : index
    %c0_12 = arith.constant 0 : index
    %20 = vector.load %arg3[%c3, %c0_12] : memref<4x8xf32, #tpu.memory_space<vmem>>, vector<1x8xf32>
    tpu.vector_store %arg3[%c3, %c0_12], %19 {strides = array<i32>} : memref<4x8xf32, #tpu.memory_space<vmem>>, vector<1x8xf32>,
    return
  }
  func.func @transform_0(%arg0: i32) -> (i32, i32) {
    %c0_i32 = arith.constant 0 : i32
    %c0_i32_0 = arith.constant 0 : i32
    return %arg0, %c0_i32 : i32, i32
  }
  func.func @transform_1(%arg0: i32) -> (i32, i32) {
    %c0_i32 = arith.constant 0 : i32
    %c0_i32_0 = arith.constant 0 : i32
    %c0_i32_1 = arith.constant 0 : i32
    return %c0_i32, %c0_i32_0 : i32, i32
  }
  func.func @transform_2(%arg0: i32) -> (i32, i32) {
    %c0_i32 = arith.constant 0 : i32
    %c0_i32_0 = arith.constant 0 : i32
    return %c0_i32, %arg0 : i32, i32
  }
}

</mosaic_0001>

<llo_original>
// kernel: tpu_custom_call.1
$region0: #{tpu_custom_call.1}
  #allocation0 [shape = 'u32[]', space=smem, size = 0x4, offset = 0x4, fixed_abs, tag = 'smem constant byte address 0x4 - core index']
  #allocation1 [shape = 'u32[144,128]{1,0:T(1,128)}', space=vmem, size = 0x12000, scoped, tag = 'internal scratch']
  %s0 = inlined_call_operand.hbm [shape: f32[8,16], index: 0, kind: input, shape index: {}]
  %s1 = inlined_call_operand.hbm [shape: f32[12,16], index: 1, kind: input, shape index: {}]
  %s2 = inlined_call_operand.hbm [shape: f32[4,8], index: 2, kind: output, shape index: {}]
  %s3 = sld [smem:[#allocation0]]
  $region26: #{tpu_custom_call.1} parent=0
    _
  %s5 = ssub.s32 1, %s3
  %s6 = scalar_select 0, %s5, %s3
  $region1: #{tpu_custom_call.1} parent=0
    #allocation2 [shape = 'u8[4096]{0}', space=vmem, size = 0x1000, scoped, tag = 'input window, operand 0, single buffered']
    #allocation3 [shape = 's32[1]{0}', space=sflag, size = 0x4, scoped, tag = 'scoped memory for tpu_custom_call.1']
    #allocation4 [shape = 's32[1]{0}', space=sflag, size = 0x4, scoped, tag = 'scoped memory for tpu_custom_call.1']
    #allocation5 [shape = 'u8[8192]{0}', space=vmem, size = 0x2000, scoped, tag = 'input window, operand 1, single buffered']
    #allocation6 [shape = 's32[1]{0}', space=sflag, size = 0x4, scoped, tag = 'scoped memory for tpu_custom_call.1']
    #allocation7 [shape = 'u8[2048]{0}', space=vmem, size = 0x800, scoped, tag = 'output window, operand 0, single buffered']
    %7 = vsyncpa [#allocation3], 0
    %8 = vsyncpa [#allocation6], 0
    %9 = vsyncpa [#allocation4], 0
    // Predicated region
    $region2: #{tpu_custom_call.1} parent=1 // pred_check
      _
    $region3: #{tpu_custom_call.1} parent=1 // pred_check_branch
      %11 = sbr.rel (0) target = $region5
    $region4: #{tpu_custom_call.1} parent=1 // pred_region
      %s13 = ssub.s32 128, 128
      %14 = vsyncadd [#allocation3], %s13
      %s16 = sshll.u32 [#allocation2], 4
      %s17 = int_to_ptr.vmem [resolvable:$true] %s16
      %19 = dma.hbm_to_vmem [thread:$0]  %s0, 128, %s17, [#allocation3]
    $region5: #{tpu_custom_call.1} parent=1 // pred_fallthru
      _
    // Predicated region
    $region6: #{tpu_custom_call.1} parent=1 // pred_check
      _
    $region7: #{tpu_custom_call.1} parent=1 // pred_check_branch
      %21 = sbr.rel (0) target = $region9
    $region8: #{tpu_custom_call.1} parent=1 // pred_region
      %s23 = ssub.s32 256, 256
      %24 = vsyncadd [#allocation6], %s23
      %s25 = sshll.u32 [#allocation5], 4
      %s26 = int_to_ptr.vmem [resolvable:$true] %s25
      %31 = dma.hbm_to_vmem [thread:$0]  %s1, 256, %s26, [#allocation6], 128, 128, 8
    $region9: #{tpu_custom_call.1} parent=1 // pred_fallthru
      _
    // Predicated region
    $region10: #{tpu_custom_call.1} parent=1 // pred_check
      _
    $region11: #{tpu_custom_call.1} parent=1 // pred_check_branch
      %33 = sbr.rel (0) target = $region13
    $region12: #{tpu_custom_call.1} parent=1 // pred_region
      %34 = dma.done [#allocation3], 128
    $region13: #{tpu_custom_call.1} parent=1 // pred_fallthru
      _
    // Predicated region
    $region14: #{tpu_custom_call.1} parent=1 // pred_check
      _
    $region15: #{tpu_custom_call.1} parent=1 // pred_check_branch
      %36 = sbr.rel (0) target = $region17
    $region16: #{tpu_custom_call.1} parent=1 // pred_region
      %37 = dma.done [#allocation6], 256
    $region17: #{tpu_custom_call.1} parent=1 // pred_fallthru
      _
    %v38 = vld [vmem:[#allocation5] sm:$0xff]
    %v39 = vld [vmem:[#allocation5 + $0x8] sm:$0xf]
    %v40 = vld [vmem:[#allocation2] sm:$0xff]
    %vm41 = vcmask 130048
    %v43 = vsel %vm41, %v38, 0
    %v46 = vsel %vm41, %v39, 0
    %v49 = vsel %vm41, %v40, 0
    %51 = vmatprep.subr.mxu0 0.0
    %52 = vmatpush1.xpose.msra.mxu0 0.0
    %53 = vmatprep.subr.mxu0 0.0
    %54 = vmatpush1.xpose.msra.mxu0 0.0
    %55 = vmatprep.subr.mxu0 0.0
    %56 = vmatpush1.xpose.msra.mxu0 0.0
    %57 = vmatprep.subr.mxu0 0.0
    %58 = vmatpush1.xpose.msra.mxu0 0.0
    %59 = vmatprep.subr.mxu0 0.0
    %60 = vmatpush1.xpose.msra.mxu0 0.0
    %61 = vmatprep.subr.mxu0 0.0
    %62 = vmatpush1.xpose.msra.mxu0 0.0
    %63 = vmatprep.subr.mxu0 0.0
    %64 = vmatpush1.xpose.msra.mxu0 0.0
    %65 = vmatprep.subr.mxu0 0.0
    %66 = vmatpush1.xpose.msra.mxu0 0.0
    %67 = vmatprep.subr.mxu0 0.0
    %68 = vmatpush1.xpose.msra.mxu0 0.0
    %69 = vmatprep.subr.mxu0 0.0
    %70 = vmatpush1.xpose.msra.mxu0 0.0
    %71 = vmatprep.subr.mxu0 0.0
    %72 = vmatpush1.xpose.msra.mxu0 0.0
    %73 = vmatprep.subr.mxu0 0.0
    %74 = vmatpush1.xpose.msra.mxu0 0.0
    %75 = vmatprep.subr.mxu0 0.0
    %76 = vmatpush1.xpose.msra.mxu0 0.0
    %77 = vmatprep.subr.mxu0 0.0
    %78 = vmatpush1.xpose.msra.mxu0 0.0
    %79 = vmatprep.subr.mxu0 0.0
    %80 = vmatpush1.xpose.msra.mxu0 0.0
    %81 = vmatprep.subr.mxu0 0.0
    %82 = vmatpush1.xpose.msra.mxu0 %v49
    %83 = vmatprep.subr.mxu0 0.0
    %84 = vmatpush2.xpose.msra.mxu0 0.0
    %85 = vmatprep.subr.mxu0 0.0
    %86 = vmatpush2.xpose.msra.mxu0 0.0
    %87 = vmatprep.subr.mxu0 0.0
    %88 = vmatpush2.xpose.msra.mxu0 0.0
    %89 = vmatprep.subr.mxu0 0.0
    %90 = vmatpush2.xpose.msra.mxu0 0.0
    %91 = vmatprep.subr.mxu0 0.0
    %92 = vmatpush2.xpose.msra.mxu0 0.0
    %93 = vmatprep.subr.mxu0 0.0
    %94 = vmatpush2.xpose.msra.mxu0 0.0
    %95 = vmatprep.subr.mxu0 0.0
    %96 = vmatpush2.xpose.msra.mxu0 0.0
    %97 = vmatprep.subr.mxu0 0.0
    %98 = vmatpush2.xpose.msra.mxu0 0.0
    %99 = vmatprep.subr.mxu0 0.0
    %100 = vmatpush2.xpose.msra.mxu0 0.0
    %101 = vmatprep.subr.mxu0 0.0
    %102 = vmatpush2.xpose.msra.mxu0 0.0
    %103 = vmatprep.subr.mxu0 0.0
    %104 = vmatpush2.xpose.msra.mxu0 0.0
    %105 = vmatprep.subr.mxu0 0.0
    %106 = vmatpush2.xpose.msra.mxu0 0.0
    %107 = vmatprep.subr.mxu0 0.0
    %108 = vmatpush2.xpose.msra.mxu0 0.0
    %109 = vmatprep.subr.mxu0 0.0
    %110 = vmatpush2.xpose.msra.mxu0 0.0
    %111 = vmatprep.subr.mxu0 0.0
    %112 = vmatpush2.xpose.msra.mxu0 0.0
    %113 = vmatprep.subr.mxu0 0.0
    %114 = vmatpush2.xpose.msra.mxu0 0.0
    %115 = vmatprep.mubr.f32.mxu0 0.0
    %116 = vmatmul.mubr.f32.gmra.mxu0 %v43
    %v117 = vpop.f32.mrf.mxu0
    %v118 = vadd.f32 0.0, %v117
    %v119 = vpop.f32.mrf.mxu0
    %120 = vmatprep.mubr.f32.mxu0 0.0
    %121 = vmatmul.mubr.f32.gmra.mxu0 %v46
    %v122 = vpop.f32.mrf.mxu0
    %v123 = vadd.f32 0.0, %v122
    %v124 = vpop.f32.mrf.mxu0
    %125 = vdwg.mxu0
    %v126 = vmax.f32 %v118, 0.0
    %v127 = vmax.f32 %v123, 0.0
    %vm128 = vcmask 59392
    %v129 = vsel %vm128, %v126, 0.0
    %v130 = vrot.slane %v129, 4
    %v131 = vadd.f32 %v129, %v130
    %v132 = vrot.slane %v131, 2
    %v133 = vadd.f32 %v131, %v132
    %v134 = vrot.slane %v133, 1
    %v135 = vadd.f32 %v133, %v134
    %vm136 = vcmask 57344
    %137 = vst.msk [vmem:[#allocation7] sm:$0x1] %vm136, %v135
    %v139 = vrot.slane %v126, 3
    %v141 = vsel %vm128, %v139, 0.0
    %v142 = vrot.slane %v141, 4
    %v143 = vadd.f32 %v141, %v142
    %v144 = vrot.slane %v143, 2
    %v145 = vadd.f32 %v143, %v144
    %v146 = vrot.slane %v145, 1
    %v147 = vadd.f32 %v145, %v146
    %148 = vst.msk [vmem:[#allocation7 + $0x1] sm:$0x1] %vm136, %v147
    %vm150 = vcmask 1041408
    %v151 = vrot.slane %v126, 6
    %v152 = vrot.slane %v127, 6
    %v153 = vsel %vm150, %v151, %v152
    %v155 = vsel %vm128, %v153, 0.0
    %v156 = vrot.slane %v155, 4
    %v157 = vadd.f32 %v155, %v156
    %v158 = vrot.slane %v157, 2
    %v159 = vadd.f32 %v157, %v158
    %v160 = vrot.slane %v159, 1
    %v161 = vadd.f32 %v159, %v160
    %162 = vst.msk [vmem:[#allocation7 + $0x2] sm:$0x1] %vm136, %v161
    %v163 = vrot.slane %v127, 1
    %v165 = vsel %vm128, %v163, 0.0
    %v166 = vrot.slane %v165, 4
    %v167 = vadd.f32 %v165, %v166
    %v168 = vrot.slane %v167, 2
    %v169 = vadd.f32 %v167, %v168
    %v170 = vrot.slane %v169, 1
    %v171 = vadd.f32 %v169, %v170
    %172 = vst.msk [vmem:[#allocation7 + $0x3] sm:$0x1] %vm136, %v171
    // Predicated region
    $region18: #{tpu_custom_call.1} parent=1 // pred_check
      _
    $region19: #{tpu_custom_call.1} parent=1 // pred_check_branch
      %174 = sbr.rel (0) target = $region21
    $region20: #{tpu_custom_call.1} parent=1 // pred_region
      %s176 = ssub.s32 64, 64
      %177 = vsyncadd [#allocation4], %s176
      %s179 = sshll.u32 [#allocation7], 4
      %s180 = int_to_ptr.vmem [resolvable:$true] %s179
      %182 = dma.vmem_to_hbm [thread:$0]  %s180, 64, %s2, [#allocation4]
    $region21: #{tpu_custom_call.1} parent=1 // pred_fallthru
      _
    // Predicated region
    $region22: #{tpu_custom_call.1} parent=1 // pred_check
      _
    $region23: #{tpu_custom_call.1} parent=1 // pred_check_branch
      %184 = sbr.rel (0) target = $region25
    $region24: #{tpu_custom_call.1} parent=1 // pred_region
      %185 = dma.done [#allocation4], 64
    $region25: #{tpu_custom_call.1} parent=1 // pred_fallthru
      _
    %186 = vsyncpa [#allocation3], 1
    %187 = vsyncpa [#allocation6], 1
    %188 = vsyncpa [#allocation4], 1

</llo_original>
